<compile_context>
chip_gen: v5e
topology: v5e:2x2
jax: 0.10.0
libtpu: 0.0.40
codegen_flags: <defaults>
</compile_context>

<pallas_src>
import functools

import jax
import jax.numpy as jnp
from jax.experimental import pallas as pl
from jax.experimental.pallas import tpu as pltpu


# ----------------------------------------------------------------------------
# Kernel
# ----------------------------------------------------------------------------
def _decoder_kernel(
    emb_ref,        # (B, E_emb)       embedded input tokens
    dh_ref,         # (B, HP)          decoder hidden, zero-padded H -> HP
    enc_ref,        # (B, S, 2E)       encoder_all_hidden
    uh_ref,         # (B, S, A)        precomputed enc @ U_w + b_u + b_w
    Ww_ref,         # (HP, A)          rows zero-padded
    vw_ref,         # (1, A)
    Wih_ref,        # (E_emb + 2E, 3*HP)   [Wih_e; Wih_c], gate cols padded
    Whh_ref,        # (HP, 3*HP)
    bih_ref,        # (1, 3*HP)
    bhh_ref,        # (1, 3*HP)
    Wfc_ref,        # (HP, OP)
    bfc_ref,        # (1, OP)
    out_ref,        # (B, OP + HP)     [prediction | new hidden], lane-dense
    *,
    HP: int,
    OP: int,
    E_emb: int,
):
    emb = emb_ref[...]                       # (B, E_emb)
    dh = dh_ref[...]                         # (B, HP)
    enc = enc_ref[...]                       # (B, S, 2E)
    Uh = uh_ref[...]                         # (B, S, A)  (both attn biases folded in)

    # ---- Bahdanau attention -------------------------------------------------
    Ws = jnp.dot(dh, Ww_ref[...], preferred_element_type=jnp.float32)        # (B, A)
    act = jnp.tanh(Ws[:, None, :] + Uh)                                      # (B, S, A)
    energy = jnp.sum(act * vw_ref[...][None, :, :], axis=-1)                 # (B, S)

    # softmax over src_len
    e_max = jnp.max(energy, axis=-1, keepdims=True)
    e_exp = jnp.exp(energy - e_max)
    alpha = e_exp * pl.reciprocal(jnp.sum(e_exp, axis=-1, keepdims=True))    # (B, S)

    # context = bmm(alpha, encoder_all_hidden) -> (B, 2E)
    # TODO(synk): for large src_len, tile over S (online softmax) instead of a
    #             single sublane reduction.
    context = jnp.sum(alpha[:, :, None] * enc, axis=1)                       # (B, 2E)

    # ---- single-step GRU (PyTorch gate order: r, z, n) -----------------------
    gi = (jnp.dot(emb, Wih_ref[:E_emb, :], preferred_element_type=jnp.float32)
          + jnp.dot(context, Wih_ref[E_emb:, :], preferred_element_type=jnp.float32)
          + bih_ref[...])                                                    # (B, 3*HP)
    gh = jnp.dot(dh, Whh_ref[...], preferred_element_type=jnp.float32) + bhh_ref[...]

    r = jax.nn.sigmoid(gi[:, 0 * HP:1 * HP] + gh[:, 0 * HP:1 * HP])
    z = jax.nn.sigmoid(gi[:, 1 * HP:2 * HP] + gh[:, 1 * HP:2 * HP])
    n = jnp.tanh(gi[:, 2 * HP:3 * HP] + r * gh[:, 2 * HP:3 * HP])
    h_new = (1.0 - z) * n + z * dh                                           # (B, HP)

    # ---- output projection ----------------------------------------------------
    pred = (jnp.dot(h_new, Wfc_ref[...], preferred_element_type=jnp.float32)
            + bfc_ref[...])                                                  # (B, OP)

    # Single lane-dense output slab: [prediction | new hidden]; both writes are
    # 128-aligned, unmasked stores.
    out_ref[:, :OP] = pred
    out_ref[:, OP:] = h_new


# ----------------------------------------------------------------------------
# Glue
# ----------------------------------------------------------------------------
def _round_up(x, m):
    return ((x + m - 1) // m) * m


def _pad_last(a, new):
    pad = [(0, 0)] * a.ndim
    pad[-1] = (0, new - a.shape[-1])
    return jnp.pad(a, pad)


def _pad_axis0(a, new):
    pad = [(0, 0)] * a.ndim
    pad[0] = (0, new - a.shape[0])
    return jnp.pad(a, pad)


def _pad_gate_cols(w, H, HP):
    """Pad each of the 3 GRU gate blocks in the last dim from H to HP."""
    lead = w.shape[:-1]
    w3 = w.reshape(*lead, 3, H)
    w3 = _pad_last(w3, HP)
    return w3.reshape(*lead, 3 * HP)


def bahdanau_attention_decoder(input_token, decoder_hidden, encoder_all_hidden, params):
    """JAX glue: embedding lookup, step-invariant projection, weight padding,
    then one Pallas kernel call."""
    B, H = decoder_hidden.shape
    _, S, twoE = encoder_all_hidden.shape
    E_emb = params["embedding"].shape[1]
    A = params["W_w"].shape[1]
    O = params["W_fc"].shape[1]
    HP = _round_up(H, 128)
    OP = _round_up(O, 128)

    # Embedding lookup: data-dependent gather kept in JAX glue.
    # TODO(synk): could be done in-kernel with scalar-prefetched token ids +
    #             per-row DMA gather for very large vocabularies.
    embedded = params["embedding"][input_token]                         # (B, E_emb)

    # Step-invariant encoder projection hoisted out of the per-step kernel;
    # both attention biases (b_u + b_w) folded in so the kernel attention path
    # is bias-free.
    Uh = (jnp.einsum("bse,ea->bsa", encoder_all_hidden, params["U_w"])
          + params["b_u"][0] + params["b_w"][0])                        # (B, S, A)

    # Pad hidden dim to HP (zeros) so the GRU path / stores are lane-dense.
    dh_pad = _pad_last(decoder_hidden, HP)                              # (B, HP)
    Ww_pad = _pad_axis0(params["W_w"], HP)                              # (HP, A)
    Wih = jnp.concatenate([params["Wih_e"], params["Wih_c"]], axis=0)   # (E_emb+2E, 3H)
    Wih_pad = _pad_gate_cols(Wih, H, HP)                                # (E_emb+2E, 3HP)
    Whh_pad = _pad_gate_cols(_pad_axis0(params["Whh"], HP), H, HP)      # (HP, 3HP)
    bih_pad = _pad_gate_cols(params["b_ih"], H, HP)                     # (1, 3HP)
    bhh_pad = _pad_gate_cols(params["b_hh"], H, HP)                     # (1, 3HP)
    Wfc_pad = _pad_last(_pad_axis0(params["W_fc"], HP), OP)             # (HP, OP)
    bfc_pad = _pad_last(params["b_fc"], OP)                             # (1, OP)

    args = (
        embedded, dh_pad, encoder_all_hidden, Uh,
        Ww_pad, params["v_w"],
        Wih_pad, Whh_pad, bih_pad, bhh_pad,
        Wfc_pad, bfc_pad,
    )

    flops = 2 * B * (HP * A + S * A + S * twoE
                     + (E_emb + twoE) * 3 * HP + HP * 3 * HP + HP * OP)
    transcendentals = B * (S * A + S + 3 * HP)
    bytes_accessed = 4 * (sum(int(a.size) for a in args) + B * (OP + HP))

    vmem_spec = pl.BlockSpec(memory_space=pltpu.MemorySpace.VMEM)
    out = pl.pallas_call(
        functools.partial(_decoder_kernel, HP=HP, OP=OP, E_emb=E_emb),
        out_shape=jax.ShapeDtypeStruct((B, OP + HP), jnp.float32),
        in_specs=[vmem_spec] * len(args),
        out_specs=vmem_spec,
        cost_estimate=pl.CostEstimate(
            flops=flops, transcendentals=transcendentals,
            bytes_accessed=bytes_accessed),
    )(*args)

    prediction = out[:, :O]
    final_hidden = out[:, OP:OP + H]
    return prediction, final_hidden


# ----------------------------------------------------------------------------
# Pure-JAX reference (mirrors the PyTorch forward exactly)
# ----------------------------------------------------------------------------
def _reference(input_token, decoder_hidden, encoder_all_hidden, params):
    dh = decoder_hidden
    enc = encoder_all_hidden
    emb = params["embedding"][input_token]
    Ws = dh @ params["W_w"] + params["b_w"][0]
    Uh = enc @ params["U_w"] + params["b_u"][0]
    energy = jnp.sum(jnp.tanh(Ws[:, None, :] + Uh) * params["v_w"][0][None, None, :], -1)
    alpha = jax.nn.softmax(energy, axis=1)
    context = jnp.einsum("bs,bse->be", alpha, enc)
    H = dh.shape[1]
    gi = emb @ params["Wih_e"] + context @ params["Wih_c"] + params["b_ih"][0]
    gh = dh @ params["Whh"] + params["b_hh"][0]
    r = jax.nn.sigmoid(gi[:, :H] + gh[:, :H])
    z = jax.nn.sigmoid(gi[:, H:2 * H] + gh[:, H:2 * H])
    n = jnp.tanh(gi[:, 2 * H:] + r * gh[:, 2 * H:])
    h_new = (1 - z) * n + z * dh
    pred = h_new @ params["W_fc"] + params["b_fc"][0]
    return pred, h_new


def init_params(key, output_dim, embed_dim, decoder_hidden_dim, encoder_hidden_dim,
                attention_dim):
    twoE = 2 * encoder_hidden_dim
    H = decoder_hidden_dim
    ks = jax.random.split(key, 12)
    s = 0.1
    params = {
        "embedding": s * jax.random.normal(ks[0], (output_dim, embed_dim), jnp.float32),
        # attention: W (H->A), U (2E->A), v (A->1, no bias); stored transposed
        "W_w": s * jax.random.normal(ks[1], (H, attention_dim), jnp.float32),
        "b_w": s * jax.random.normal(ks[2], (1, attention_dim), jnp.float32),
        "U_w": s * jax.random.normal(ks[3], (twoE, attention_dim), jnp.float32),
        "b_u": s * jax.random.normal(ks[4], (1, attention_dim), jnp.float32),
        "v_w": s * jax.random.normal(ks[5], (1, attention_dim), jnp.float32),
        # GRU weight_ih (3H, gru_in) split by input part and transposed
        "Wih_e": s * jax.random.normal(ks[6], (embed_dim, 3 * H), jnp.float32),
        "Wih_c": s * jax.random.normal(ks[7], (twoE, 3 * H), jnp.float32),
        "Whh": s * jax.random.normal(ks[8], (H, 3 * H), jnp.float32),
        "b_ih": s * jax.random.normal(ks[9], (1, 3 * H), jnp.float32),
        "b_hh": s * jax.random.normal(ks[10], (1, 3 * H), jnp.float32),
        # fc: (H -> output_dim)
        "W_fc": s * jax.random.normal(ks[11], (H, output_dim), jnp.float32),
        "b_fc": jnp.zeros((1, output_dim), jnp.float32),
    }
    return params


if __name__ == "__main__":
    # Small, module-consistent shapes. B=8 fills all f32 sublanes.
    B = 8
    S = 8                     # src_len
    output_dim = 32
    embed_dim = 16
    decoder_hidden_dim = 32
    encoder_hidden_dim = 16   # -> encoder feature dim = 32
    attention_dim = 32

    key = jax.random.PRNGKey(0)
    k_tok, k_dh, k_enc, k_par = jax.random.split(key, 4)

    input_token = jax.random.randint(k_tok, (B,), 0, output_dim)
    decoder_hidden = jax.random.normal(k_dh, (B, decoder_hidden_dim), jnp.float32)
    encoder_all_hidden = jax.random.normal(
        k_enc, (B, S, 2 * encoder_hidden_dim), jnp.float32)

    params = init_params(k_par, output_dim, embed_dim, decoder_hidden_dim,
                         encoder_hidden_dim, attention_dim)

    pred, hid = bahdanau_attention_decoder(
        input_token, decoder_hidden, encoder_all_hidden, params)
    jax.block_until_ready((pred, hid))

    pred_ref, hid_ref = _reference(
        input_token, decoder_hidden, encoder_all_hidden, params)

    assert pred.shape == (B, output_dim) and hid.shape == (B, decoder_hidden_dim)
    assert jnp.allclose(pred, pred_ref, atol=1e-5, rtol=1e-5)
    assert jnp.allclose(hid, hid_ref, atol=1e-5, rtol=1e-5)
    print("KERNEL_OK")
</pallas_src>

<mosaic_0001>
module attributes {stable_mosaic.version = 11 : i64} {
  func.func @_decoder_kernel(%arg0: memref<8x16xf32, #tpu.memory_space<vmem>>, %arg1: memref<8x128xf32, #tpu.memory_space<vmem>>, %arg2: memref<8x8x32xf32, #tpu.memory_space<vmem>>, %arg3: memref<8x8x32xf32, #tpu.memory_space<vmem>>, %arg4: memref<128x32xf32, #tpu.memory_space<vmem>>, %arg5: memref<1x32xf32, #tpu.memory_space<vmem>>, %arg6: memref<48x384xf32, #tpu.memory_space<vmem>>, %arg7: memref<128x384xf32, #tpu.memory_space<vmem>>, %arg8: memref<1x384xf32, #tpu.memory_space<vmem>>, %arg9: memref<1x384xf32, #tpu.memory_space<vmem>>, %arg10: memref<128x128xf32, #tpu.memory_space<vmem>>, %arg11: memref<1x128xf32, #tpu.memory_space<vmem>>, %arg12: memref<8x256xf32, #tpu.memory_space<vmem>>) attributes {dimension_semantics = [], scalar_prefetch = 0 : i64, scratch_operands = 0 : i64, tpu.core_type = #tpu.core_type<tc>} {
    %c0 = arith.constant 0 : index
    %c0_0 = arith.constant 0 : index
    %0 = vector.load %arg0[%c0, %c0_0] : memref<8x16xf32, #tpu.memory_space<vmem>>, vector<8x16xf32>
    %c0_1 = arith.constant 0 : index
    %c0_2 = arith.constant 0 : index
    %1 = vector.load %arg1[%c0_1, %c0_2] : memref<8x128xf32, #tpu.memory_space<vmem>>, vector<8x128xf32>
    %c0_3 = arith.constant 0 : index
    %c0_4 = arith.constant 0 : index
    %c0_5 = arith.constant 0 : index
    %2 = vector.load %arg2[%c0_3, %c0_4, %c0_5] : memref<8x8x32xf32, #tpu.memory_space<vmem>>, vector<8x8x32xf32>
    %c0_6 = arith.constant 0 : index
    %c0_7 = arith.constant 0 : index
    %c0_8 = arith.constant 0 : index
    %3 = vector.load %arg3[%c0_6, %c0_7, %c0_8] : memref<8x8x32xf32, #tpu.memory_space<vmem>>, vector<8x8x32xf32>
    %c0_9 = arith.constant 0 : index
    %c0_10 = arith.constant 0 : index
    %4 = vector.load %arg4[%c0_9, %c0_10] : memref<128x32xf32, #tpu.memory_space<vmem>>, vector<128x32xf32>
    %cst = arith.constant dense<0.000000e+00> : vector<8x32xf32>
    %5 = tpu.matmul %1, %4, %cst {dimension_numbers = #tpu.dot_dimension_numbers<[1], [0], [0], [1], [0, 0, 1, 1], [], []>} : vector<8x128xf32>, vector<128x32xf32>, vector<8x32xf32> -> vector<8x32xf32>
    %6 = vector.shape_cast %5 : vector<8x32xf32> to vector<8x1x32xf32>
    %7 = vector.broadcast %6 : vector<8x1x32xf32> to vector<8x8x32xf32>
    %8 = arith.addf %7, %3 : vector<8x8x32xf32>
    %9 = math.tanh %8 : vector<8x8x32xf32>
    %c0_11 = arith.constant 0 : index
    %c0_12 = arith.constant 0 : index
    %10 = vector.load %arg5[%c0_11, %c0_12] : memref<1x32xf32, #tpu.memory_space<vmem>>, vector<1x32xf32>
    %11 = vector.shape_cast %10 : vector<1x32xf32> to vector<1x1x32xf32>
    %12 = vector.broadcast %11 : vector<1x1x32xf32> to vector<8x8x32xf32>
    %13 = arith.mulf %9, %12 : vector<8x8x32xf32>
    %cst_13 = arith.constant dense<0.000000e+00> : vector<8x8xf32>
    %14 = vector.multi_reduction <add>, %13, %cst_13 [2] : vector<8x8x32xf32> to vector<8x8xf32>
    %cst_14 = arith.constant dense<0xFF800000> : vector<8xf32>
    %15 = vector.multi_reduction <maximumf>, %14, %cst_14 [1] : vector<8x8xf32> to vector<8xf32>
    %16 = vector.shape_cast %15 : vector<8xf32> to vector<8x1xf32>
    %17 = vector.broadcast %16 : vector<8x1xf32> to vector<8x8xf32>
    %18 = arith.subf %14, %17 : vector<8x8xf32>
    %19 = math.exp %18 : vector<8x8xf32>
    %cst_15 = arith.constant dense<0.000000e+00> : vector<8xf32>
    %20 = vector.multi_reduction <add>, %19, %cst_15 [1] : vector<8x8xf32> to vector<8xf32>
    %21 = vector.shape_cast %20 : vector<8xf32> to vector<8x1xf32>
    %22 = tpu.reciprocal %21 : vector<8x1xf32> -> vector<8x1xf32>
    %23 = vector.broadcast %22 : vector<8x1xf32> to vector<8x8xf32>
    %24 = arith.mulf %19, %23 : vector<8x8xf32>
    %25 = vector.shape_cast %24 : vector<8x8xf32> to vector<8x8x1xf32>
    %26 = vector.broadcast %25 : vector<8x8x1xf32> to vector<8x8x32xf32>
    %27 = arith.mulf %26, %2 : vector<8x8x32xf32>
    %cst_16 = arith.constant dense<0.000000e+00> : vector<8x32xf32>
    %28 = vector.multi_reduction <add>, %27, %cst_16 [1] : vector<8x8x32xf32> to vector<8x32xf32>
    %c0_17 = arith.constant 0 : index
    %c0_18 = arith.constant 0 : index
    %29 = vector.load %arg6[%c0_17, %c0_18] : memref<48x384xf32, #tpu.memory_space<vmem>>, vector<16x384xf32>
    %cst_19 = arith.constant dense<0.000000e+00> : vector<8x384xf32>
    %30 = tpu.matmul %0, %29, %cst_19 {dimension_numbers = #tpu.dot_dimension_numbers<[1], [0], [0], [1], [0, 0, 1, 1], [], []>} : vector<8x16xf32>, vector<16x384xf32>, vector<8x384xf32> -> vector<8x384xf32>
    %c16 = arith.constant 16 : index
    %c0_20 = arith.constant 0 : index
    %31 = vector.load %arg6[%c16, %c0_20] : memref<48x384xf32, #tpu.memory_space<vmem>>, vector<32x384xf32>
    %cst_21 = arith.constant dense<0.000000e+00> : vector<8x384xf32>
    %32 = tpu.matmul %28, %31, %cst_21 {dimension_numbers = #tpu.dot_dimension_numbers<[1], [0], [0], [1], [0, 0, 1, 1], [], []>} : vector<8x32xf32>, vector<32x384xf32>, vector<8x384xf32> -> vector<8x384xf32>
    %33 = arith.addf %30, %32 : vector<8x384xf32>
    %c0_22 = arith.constant 0 : index
    %c0_23 = arith.constant 0 : index
    %34 = vector.load %arg8[%c0_22, %c0_23] : memref<1x384xf32, #tpu.memory_space<vmem>>, vector<1x384xf32>
    %35 = vector.broadcast %34 : vector<1x384xf32> to vector<8x384xf32>
    %36 = arith.addf %33, %35 : vector<8x384xf32>
    %c0_24 = arith.constant 0 : index
    %c0_25 = arith.constant 0 : index
    %37 = vector.load %arg7[%c0_24, %c0_25] : memref<128x384xf32, #tpu.memory_space<vmem>>, vector<128x384xf32>
    %cst_26 = arith.constant dense<0.000000e+00> : vector<8x384xf32>
    %38 = tpu.matmul %1, %37, %cst_26 {dimension_numbers = #tpu.dot_dimension_numbers<[1], [0], [0], [1], [0, 0, 1, 1], [], []>} : vector<8x128xf32>, vector<128x384xf32>, vector<8x384xf32> -> vector<8x384xf32>
    %c0_27 = arith.constant 0 : index
    %c0_28 = arith.constant 0 : index
    %39 = vector.load %arg9[%c0_27, %c0_28] : memref<1x384xf32, #tpu.memory_space<vmem>>, vector<1x384xf32>
    %40 = vector.broadcast %39 : vector<1x384xf32> to vector<8x384xf32>
    %41 = arith.addf %38, %40 : vector<8x384xf32>
    %42 = vector.extract_strided_slice %36 {offsets = [0, 0], sizes = [8, 128], strides = [1, 1]} : vector<8x384xf32> to vector<8x128xf32>
    %43 = vector.extract_strided_slice %41 {offsets = [0, 0], sizes = [8, 128], strides = [1, 1]} : vector<8x384xf32> to vector<8x128xf32>
    %44 = arith.addf %42, %43 : vector<8x128xf32>
    %45 = arith.negf %44 : vector<8x128xf32>
    %46 = math.exp %45 : vector<8x128xf32>
    %cst_29 = arith.constant 1.000000e+00 : f32
    %47 = vector.broadcast %cst_29 : f32 to vector<8x128xf32>
    %48 = arith.addf %47, %46 : vector<8x128xf32>
    %49 = arith.divf %47, %48 : vector<8x128xf32>
    %50 = vector.extract_strided_slice %36 {offsets = [0, 128], sizes = [8, 128], strides = [1, 1]} : vector<8x384xf32> to vector<8x128xf32>
    %51 = vector.extract_strided_slice %41 {offsets = [0, 128], sizes = [8, 128], strides = [1, 1]} : vector<8x384xf32> to vector<8x128xf32>
    %52 = arith.addf %50, %51 : vector<8x128xf32>
    %53 = arith.negf %52 : vector<8x128xf32>
    %54 = math.exp %53 : vector<8x128xf32>
    %cst_30 = arith.constant 1.000000e+00 : f32
    %55 = vector.broadcast %cst_30 : f32 to vector<8x128xf32>
    %56 = arith.addf %55, %54 : vector<8x128xf32>
    %57 = arith.divf %55, %56 : vector<8x128xf32>
    %58 = vector.extract_strided_slice %36 {offsets = [0, 256], sizes = [8, 128], strides = [1, 1]} : vector<8x384xf32> to vector<8x128xf32>
    %59 = vector.extract_strided_slice %41 {offsets = [0, 256], sizes = [8, 128], strides = [1, 1]} : vector<8x384xf32> to vector<8x128xf32>
    %60 = arith.mulf %49, %59 : vector<8x128xf32>
    %61 = arith.addf %58, %60 : vector<8x128xf32>
    %62 = math.tanh %61 : vector<8x128xf32>
    %cst_31 = arith.constant 1.000000e+00 : f32
    %63 = vector.broadcast %cst_31 : f32 to vector<8x128xf32>
    %64 = arith.subf %63, %57 : vector<8x128xf32>
    %65 = arith.mulf %64, %62 : vector<8x128xf32>
    %66 = arith.mulf %57, %1 : vector<8x128xf32>
    %67 = arith.addf %65, %66 : vector<8x128xf32>
    %c0_32 = arith.constant 0 : index
    %c0_33 = arith.constant 0 : index
    %68 = vector.load %arg10[%c0_32, %c0_33] : memref<128x128xf32, #tpu.memory_space<vmem>>, vector<128x128xf32>
    %cst_34 = arith.constant dense<0.000000e+00> : vector<8x128xf32>
    %69 = tpu.matmul %67, %68, %cst_34 {dimension_numbers = #tpu.dot_dimension_numbers<[1], [0], [0], [1], [0, 0, 1, 1], [], []>} : vector<8x128xf32>, vector<128x128xf32>, vector<8x128xf32> -> vector<8x128xf32>
    %c0_35 = arith.constant 0 : index
    %c0_36 = arith.constant 0 : index
    %70 = vector.load %arg11[%c0_35, %c0_36] : memref<1x128xf32, #tpu.memory_space<vmem>>, vector<1x128xf32>
    %71 = vector.broadcast %70 : vector<1x128xf32> to vector<8x128xf32>
    %72 = arith.addf %69, %71 : vector<8x128xf32>
    %c0_37 = arith.constant 0 : index
    %c0_38 = arith.constant 0 : index
    %73 = vector.load %arg12[%c0_37, %c0_38] : memref<8x256xf32, #tpu.memory_space<vmem>>, vector<8x128xf32>
    tpu.vector_store %arg12[%c0_37, %c0_38], %72 {strides = array<i32>} : memref<8x256xf32, #tpu.memory_space<vmem>>, vector<8x128xf32>,
    %c0_39 = arith.constant 0 : index
    %c128 = arith.constant 128 : index
    %74 = vector.load %arg12[%c0_39, %c128] : memref<8x256xf32, #tpu.memory_space<vmem>>, vector<8x128xf32>
    tpu.vector_store %arg12[%c0_39, %c128], %67 {strides = array<i32>} : memref<8x256xf32, #tpu.memory_space<vmem>>, vector<8x128xf32>,
    return
  }
}

</mosaic_0001>

<llo_original>
// kernel: tpu_custom_call.1
$region0: #{tpu_custom_call.1}
  #allocation0 [shape = 'u32[]', space=smem, size = 0x4, offset = 0x4, fixed_abs, tag = 'smem constant byte address 0x4 - core index']
  #allocation1 [shape = 'u32[72,128]{1,0:T(1,128)}', space=vmem, size = 0x9000, scoped, tag = 'internal scratch']
  %s0 = inlined_call_operand.vmem [shape: f32[8,16], index: 0, kind: input, shape index: {}]
  %s1 = inlined_call_operand.vmem [shape: f32[8,128], index: 1, kind: input, shape index: {}]
  %s2 = inlined_call_operand.hbm [shape: f32[8,8,32], index: 2, kind: input, shape index: {}]
  %s3 = inlined_call_operand.hbm [shape: f32[8,8,32], index: 3, kind: input, shape index: {}]
  %s4 = inlined_call_operand.vmem [shape: f32[128,32], index: 4, kind: input, shape index: {}]
  %s5 = inlined_call_operand.vmem [shape: f32[1,32], index: 5, kind: input, shape index: {}]
  %s6 = inlined_call_operand.vmem [shape: f32[48,384], index: 6, kind: input, shape index: {}]
  %s7 = inlined_call_operand.hbm [shape: f32[128,384], index: 7, kind: input, shape index: {}]
  %s8 = inlined_call_operand.vmem [shape: f32[1,384], index: 8, kind: input, shape index: {}]
  %s9 = inlined_call_operand.vmem [shape: f32[1,384], index: 9, kind: input, shape index: {}]
  %s10 = inlined_call_operand.hbm [shape: f32[128,128], index: 10, kind: input, shape index: {}]
  %s11 = inlined_call_operand.vmem [shape: f32[1,128], index: 11, kind: input, shape index: {}]
  %s12 = inlined_call_operand.hbm [shape: f32[8,256], index: 12, kind: output, shape index: {}]
  %s13 = sld [smem:[#allocation0]]
  $region74: #{tpu_custom_call.1} parent=0
    _
  %s15 = ssub.s32 1, %s13
  %s16 = scalar_select 0, %s15, %s13
  $region1: #{tpu_custom_call.1} parent=0
    #allocation2 [shape = 'u8[32768]{0}', space=vmem, size = 0x8000, scoped, tag = 'input window, operand 2, single buffered']
    #allocation3 [shape = 's32[1]{0}', space=sflag, size = 0x4, scoped, tag = 'scoped memory for tpu_custom_call.1']
    #allocation4 [shape = 's32[1]{0}', space=sflag, size = 0x4, scoped, tag = 'scoped memory for tpu_custom_call.1']
    #allocation5 [shape = 'u8[32768]{0}', space=vmem, size = 0x8000, scoped, tag = 'input window, operand 3, single buffered']
    #allocation6 [shape = 's32[1]{0}', space=sflag, size = 0x4, scoped, tag = 'scoped memory for tpu_custom_call.1']
    #allocation7 [shape = 'u8[196608]{0}', space=vmem, size = 0x30000, scoped, tag = 'input window, operand 7, single buffered']
    #allocation8 [shape = 'u8[65536]{0}', space=vmem, size = 0x10000, scoped, tag = 'input window, operand 10, single buffered']
    #allocation9 [shape = 's32[1]{0}', space=sflag, size = 0x4, scoped, tag = 'scoped memory for tpu_custom_call.1']
    #allocation10 [shape = 'u8[8192]{0}', space=vmem, size = 0x2000, scoped, tag = 'output window, operand 0, single buffered']
    %17 = vsyncpa [#allocation3], 0
    %18 = vsyncpa [#allocation6], 0
    %19 = vsyncpa [#allocation9], 0
    %20 = vsyncpa [#allocation4], 0
    // Predicated region
    $region2: #{tpu_custom_call.1} parent=1 // pred_check
      _
    $region3: #{tpu_custom_call.1} parent=1 // pred_check_branch
      %22 = sbr.rel (0) target = $region5
    $region4: #{tpu_custom_call.1} parent=1 // pred_region
      _
    $region5: #{tpu_custom_call.1} parent=1 // pred_fallthru
      _
    // Predicated region
    $region6: #{tpu_custom_call.1} parent=1 // pred_check
      _
    $region7: #{tpu_custom_call.1} parent=1 // pred_check_branch
      %24 = sbr.rel (0) target = $region9
    $region8: #{tpu_custom_call.1} parent=1 // pred_region
      _
    $region9: #{tpu_custom_call.1} parent=1 // pred_fallthru
      _
    // Predicated region
    $region10: #{tpu_custom_call.1} parent=1 // pred_check
      _
    $region11: #{tpu_custom_call.1} parent=1 // pred_check_branch
      %26 = sbr.rel (0) target = $region13
    $region12: #{tpu_custom_call.1} parent=1 // pred_region
      %28 = vsyncadd [#allocation3], 0
      %s29 = sshll.u32 %s2, 4
      %s30 = int_to_ptr.hbm [resolvable:$true] %s29
      %s31 = sshll.u32 [#allocation2], 4
      %s32 = int_to_ptr.vmem [resolvable:$true] %s31
      %37 = dma.hbm_to_vmem [thread:$0]  %s30, 1024, %s32, [#allocation3], 128, 128, 8
    $region13: #{tpu_custom_call.1} parent=1 // pred_fallthru
      _
    // Predicated region
    $region14: #{tpu_custom_call.1} parent=1 // pred_check
      _
    $region15: #{tpu_custom_call.1} parent=1 // pred_check_branch
      %39 = sbr.rel (0) target = $region17
    $region16: #{tpu_custom_call.1} parent=1 // pred_region
      %41 = vsyncadd [#allocation6], 0
      %s42 = sshll.u32 %s3, 4
      %s43 = int_to_ptr.hbm [resolvable:$true] %s42
      %s44 = sshll.u32 [#allocation5], 4
      %s45 = int_to_ptr.vmem [resolvable:$true] %s44
      %50 = dma.hbm_to_vmem [thread:$0]  %s43, 1024, %s45, [#allocation6], 128, 128, 8
    $region17: #{tpu_custom_call.1} parent=1 // pred_fallthru
      _
    // Predicated region
    $region18: #{tpu_custom_call.1} parent=1 // pred_check
      _
    $region19: #{tpu_custom_call.1} parent=1 // pred_check_branch
      %52 = sbr.rel (0) target = $region21
    $region20: #{tpu_custom_call.1} parent=1 // pred_region
      _
    $region21: #{tpu_custom_call.1} parent=1 // pred_fallthru
      _
    // Predicated region
    $region22: #{tpu_custom_call.1} parent=1 // pred_check
      _
    $region23: #{tpu_custom_call.1} parent=1 // pred_check_branch
      %54 = sbr.rel (0) target = $region25
    $region24: #{tpu_custom_call.1} parent=1 // pred_region
      _
    $region25: #{tpu_custom_call.1} parent=1 // pred_fallthru
      _
    // Predicated region
    $region26: #{tpu_custom_call.1} parent=1 // pred_check
      _
    $region27: #{tpu_custom_call.1} parent=1 // pred_check_branch
      %56 = sbr.rel (0) target = $region29
    $region28: #{tpu_custom_call.1} parent=1 // pred_region
      _
    $region29: #{tpu_custom_call.1} parent=1 // pred_fallthru
      _
    // Predicated region
    $region30: #{tpu_custom_call.1} parent=1 // pred_check
      _
    $region31: #{tpu_custom_call.1} parent=1 // pred_check_branch
      %58 = sbr.rel (0) target = $region33
    $region32: #{tpu_custom_call.1} parent=1 // pred_region
      %60 = vsyncadd [#allocation6], 0
      %s61 = sshll.u32 %s7, 4
      %s62 = int_to_ptr.hbm [resolvable:$true] %s61
      %s63 = sshll.u32 [#allocation7], 4
      %s64 = int_to_ptr.vmem [resolvable:$true] %s63
      %69 = dma.hbm_to_vmem [thread:$0]  %s62, 6144, %s64, [#allocation6], 384, 384, 24
    $region33: #{tpu_custom_call.1} parent=1 // pred_fallthru
      _
    // Predicated region
    $region34: #{tpu_custom_call.1} parent=1 // pred_check
      _
    $region35: #{tpu_custom_call.1} parent=1 // pred_check_branch
      %71 = sbr.rel (0) target = $region37
    $region36: #{tpu_custom_call.1} parent=1 // pred_region
      _
    $region37: #{tpu_custom_call.1} parent=1 // pred_fallthru
      _
    // Predicated region
    $region38: #{tpu_custom_call.1} parent=1 // pred_check
      _
    $region39: #{tpu_custom_call.1} parent=1 // pred_check_branch
      %73 = sbr.rel (0) target = $region41
    $region40: #{tpu_custom_call.1} parent=1 // pred_region
      _
    $region41: #{tpu_custom_call.1} parent=1 // pred_fallthru
      _
    // Predicated region
    $region42: #{tpu_custom_call.1} parent=1 // pred_check
      _
    $region43: #{tpu_custom_call.1} parent=1 // pred_check_branch
      %75 = sbr.rel (0) target = $region45
    $region44: #{tpu_custom_call.1} parent=1 // pred_region
      %77 = vsyncadd [#allocation9], 0
      %s78 = sshll.u32 %s10, 4
      %s79 = int_to_ptr.hbm [resolvable:$true] %s78
      %s80 = sshll.u32 [#allocation8], 4
      %s81 = int_to_ptr.vmem [resolvable:$true] %s80
      %86 = dma.hbm_to_vmem [thread:$0]  %s79, 2048, %s81, [#allocation9], 128, 128, 8
    $region45: #{tpu_custom_call.1} parent=1 // pred_fallthru
      _
    // Predicated region
    $region46: #{tpu_custom_call.1} parent=1 // pred_check
      _
    $region47: #{tpu_custom_call.1} parent=1 // pred_check_branch
      %88 = sbr.rel (0) target = $region49
    $region48: #{tpu_custom_call.1} parent=1 // pred_region
      _
    $region49: #{tpu_custom_call.1} parent=1 // pred_fallthru
      _
    // Predicated region
    $region50: #{tpu_custom_call.1} parent=1 // pred_check
      _
    $region51: #{tpu_custom_call.1} parent=1 // pred_check_branch
      %90 = sbr.rel (0) target = $region53
    $region52: #{tpu_custom_call.1} parent=1 // pred_region
      %92 = dma.done [#allocation3], 1024
    $region53: #{tpu_custom_call.1} parent=1 // pred_fallthru
      _
    // Predicated region
    $region54: #{tpu_custom_call.1} parent=1 // pred_check
      _
    $region55: #{tpu_custom_call.1} parent=1 // pred_check_branch
      %94 = sbr.rel (0) target = $region57
    $region56: #{tpu_custom_call.1} parent=1 // pred_region
      %96 = dma.done [#allocation6], 1024
    $region57: #{tpu_custom_call.1} parent=1 // pred_fallthru
      _
    // Predicated region
    $region58: #{tpu_custom_call.1} parent=1 // pred_check
      _
    $region59: #{tpu_custom_call.1} parent=1 // pred_check_branch
      %98 = sbr.rel (0) target = $region61
    $region60: #{tpu_custom_call.1} parent=1 // pred_region
      %100 = dma.done [#allocation6], 6144
    $region61: #{tpu_custom_call.1} parent=1 // pred_fallthru
      _
    // Predicated region
    $region62: #{tpu_custom_call.1} parent=1 // pred_check
      _
    $region63: #{tpu_custom_call.1} parent=1 // pred_check_branch
      %102 = sbr.rel (0) target = $region65
    $region64: #{tpu_custom_call.1} parent=1 // pred_region
      %104 = dma.done [#allocation9], 2048
    $region65: #{tpu_custom_call.1} parent=1 // pred_fallthru
      _
    %v105 = vld [vmem:[%s0] sm:$0xff]
    %v106 = vld [vmem:[%s1] sm:$0xff]
    %v107 = vld [vmem:[#allocation2] sm:$0xff]
    %v108 = vld [vmem:[#allocation2 + $0x8] sm:$0xff]
    %v109 = vld [vmem:[#allocation2 + $0x10] sm:$0xff]
    %v110 = vld [vmem:[#allocation2 + $0x18] sm:$0xff]
    %v111 = vld [vmem:[#allocation2 + $0x20] sm:$0xff]
    %v112 = vld [vmem:[#allocation2 + $0x28] sm:$0xff]
    %v113 = vld [vmem:[#allocation2 + $0x30] sm:$0xff]
    %v114 = vld [vmem:[#allocation2 + $0x38] sm:$0xff]
    %v115 = vld [vmem:[#allocation5] sm:$0xff]
    %v116 = vld [vmem:[#allocation5 + $0x8] sm:$0xff]
    %v117 = vld [vmem:[#allocation5 + $0x10] sm:$0xff]
    %v118 = vld [vmem:[#allocation5 + $0x18] sm:$0xff]
    %v119 = vld [vmem:[#allocation5 + $0x20] sm:$0xff]
    %v120 = vld [vmem:[#allocation5 + $0x28] sm:$0xff]
    %v121 = vld [vmem:[#allocation5 + $0x30] sm:$0xff]
    %v122 = vld [vmem:[#allocation5 + $0x38] sm:$0xff]
    %v123 = vld [vmem:[%s4] sm:$0xff]
    %v124 = vld [vmem:[%s4 + $0x8] sm:$0xff]
    %v125 = vld [vmem:[%s4 + $0x10] sm:$0xff]
    %v126 = vld [vmem:[%s4 + $0x18] sm:$0xff]
    %v127 = vld [vmem:[%s4 + $0x20] sm:$0xff]
    %v128 = vld [vmem:[%s4 + $0x28] sm:$0xff]
    %v129 = vld [vmem:[%s4 + $0x30] sm:$0xff]
    %v130 = vld [vmem:[%s4 + $0x38] sm:$0xff]
    %v131 = vld [vmem:[%s4 + $0x40] sm:$0xff]
    %v132 = vld [vmem:[%s4 + $0x48] sm:$0xff]
    %v133 = vld [vmem:[%s4 + $0x50] sm:$0xff]
    %v134 = vld [vmem:[%s4 + $0x58] sm:$0xff]
    %v135 = vld [vmem:[%s4 + $0x60] sm:$0xff]
    %v136 = vld [vmem:[%s4 + $0x68] sm:$0xff]
    %v137 = vld [vmem:[%s4 + $0x70] sm:$0xff]
    %v138 = vld [vmem:[%s4 + $0x78] sm:$0xff]
    %139 = vmatpush.msra.mxu0 %v138
    %140 = vmatpush.msra.mxu0 %v137
    %141 = vmatpush.msra.mxu0 %v136
    %142 = vmatpush.msra.mxu0 %v135
    %143 = vmatpush.msra.mxu0 %v134
    %144 = vmatpush.msra.mxu0 %v133
    %145 = vmatpush.msra.mxu0 %v132
    %146 = vmatpush.msra.mxu0 %v131
    %147 = vmatpush.msra.mxu0 %v130
    %148 = vmatpush.msra.mxu0 %v129
    %149 = vmatpush.msra.mxu0 %v128
    %150 = vmatpush.msra.mxu0 %v127
    %151 = vmatpush.msra.mxu0 %v126
    %152 = vmatpush.msra.mxu0 %v125
    %153 = vmatpush.msra.mxu0 %v124
    %154 = vmatpush.msra.mxu0 %v123
    %155 = vmatmul.f32.gmra.mxu0 %v106
    %v156 = vpop.f32.mrf.mxu0
    %v157 = vadd.f32 0.0, %v156
    %158 = vdwg.mxu0
    %v160 = vrot.slane %v157, 1
    %v161 = vrot.slane %v157, 2
    %v162 = vrot.slane %v157, 3
    %v163 = vrot.slane %v157, 4
    %v164 = vrot.slane %v157, 5
    %v165 = vrot.slane %v157, 6
    %v166 = vrot.slane %v157, 7
    %v167 = vperm.slane %v157, 0
    %v168 = vperm.slane %v160, 0
    %v169 = vperm.slane %v161, 0
    %v170 = vperm.slane %v162, 0
    %v171 = vperm.slane %v163, 0
    %v172 = vperm.slane %v164, 0
    %v173 = vperm.slane %v165, 0
    %v174 = vperm.slane %v166, 0
    %v183 = vadd.f32 %v167, %v115
    %v184 = vadd.f32 %v168, %v116
    %v185 = vadd.f32 %v169, %v117
    %v186 = vadd.f32 %v170, %v118
    %v187 = vadd.f32 %v171, %v119
    %v188 = vadd.f32 %v172, %v120
    %v189 = vadd.f32 %v173, %v121
    %v190 = vadd.f32 %v174, %v122
    %v191 = vtanh.pop %v183
    %v192 = vtanh.pop %v184
    %v193 = vtanh.pop %v185
    %v194 = vtanh.pop %v186
    %v195 = vtanh.pop %v187
    %v196 = vtanh.pop %v188
    %v197 = vtanh.pop %v189
    %v198 = vtanh.pop %v190
    %v199 = vld [vmem:[%s5] sm:$0x1]
    %v201 = vperm.slane %v199, 0
    %v203 = vmul.f32 %v191, %v201
    %v204 = vmul.f32 %v192, %v201
    %v205 = vmul.f32 %v193, %v201
    %v206 = vmul.f32 %v194, %v201
    %v207 = vmul.f32 %v195, %v201
    %v208 = vmul.f32 %v196, %v201
    %v209 = vmul.f32 %v197, %v201
    %v210 = vmul.f32 %v198, %v201
    %vm211 = vcmask 261120
    %v212 = vsel %vm211, %v203, 0.0
    %213 = vadd.xlane.f32.xlu0 %v212
    %v214 = vpop.xlane.xlu0 %213
    %v215 = vsel %vm211, %v204, 0.0
    %216 = vadd.xlane.f32.xlu0 %v215
    %v217 = vpop.xlane.xlu0 %216
    %v218 = vsel %vm211, %v205, 0.0
    %219 = vadd.xlane.f32.xlu0 %v218
    %v220 = vpop.xlane.xlu0 %219
    %v221 = vsel %vm211, %v206, 0.0
    %222 = vadd.xlane.f32.xlu0 %v221
    %v223 = vpop.xlane.xlu0 %222
    %v224 = vsel %vm211, %v207, 0.0
    %225 = vadd.xlane.f32.xlu0 %v224
    %v226 = vpop.xlane.xlu0 %225
    %v227 = vsel %vm211, %v208, 0.0
    %228 = vadd.xlane.f32.xlu0 %v227
    %v229 = vpop.xlane.xlu0 %228
    %v230 = vsel %vm211, %v209, 0.0
    %231 = vadd.xlane.f32.xlu0 %v230
    %v232 = vpop.xlane.xlu0 %231
    %v233 = vsel %vm211, %v210, 0.0
    %234 = vadd.xlane.f32.xlu0 %v233
    %v235 = vpop.xlane.xlu0 %234
    %v244 = vlaneseq
    %v245 = vand.u32 %v244, 127
    %v246 = vperm.slane %v214, %v245
    %v247 = vperm.slane %v217, %v245
    %v248 = vperm.slane %v220, %v245
    %v249 = vperm.slane %v223, %v245
    %v250 = vperm.slane %v226, %v245
    %v251 = vperm.slane %v229, %v245
    %v252 = vperm.slane %v232, %v245
    %v253 = vperm.slane %v235, %v245
    %vm254 = vcmask 1041409
    %v255 = vsel %vm254, %v247, %v246
    %vm256 = vcmask 1042434
    %v257 = vsel %vm256, %v248, %v255
    %vm258 = vcmask 1043459
    %v259 = vsel %vm258, %v249, %v257
    %vm260 = vcmask 1044484
    %v261 = vsel %vm260, %v250, %v259
    %vm262 = vcmask 1045509
    %v263 = vsel %vm262, %v251, %v261
    %vm264 = vcmask 1046534
    %v265 = vsel %vm264, %v252, %v263
    %vm266 = vcmask 1047559
    %v267 = vsel %vm266, %v253, %v265
    %vm269 = vcmask 64512
    %v270 = vsel %vm269, %v267, -inf
    %271 = vmax.xlane.f32.xlu0 %v270
    %v272 = vpop.xlane.xlu0 %271
    %v274 = vperm.slane %v272, 0
    %v275 = vperm.slane %v272, 1
    %v276 = vperm.slane %v272, 2
    %v277 = vperm.slane %v272, 3
    %v278 = vperm.slane %v272, 4
    %v279 = vperm.slane %v272, 5
    %v280 = vperm.slane %v272, 6
    %v281 = vperm.slane %v272, 7
    %v290 = vsub.f32 %v214, %v274
    %v291 = vsub.f32 %v217, %v275
    %v292 = vsub.f32 %v220, %v276
    %v293 = vsub.f32 %v223, %v277
    %v294 = vsub.f32 %v226, %v278
    %v295 = vsub.f32 %v229, %v279
    %v296 = vsub.f32 %v232, %v280
    %v297 = vsub.f32 %v235, %v281
    %v298 = vmul.f32 %v290, 1.442695
    %v299 = vpow.pop %v298
    %v300 = vmul.f32 %v291, 1.442695
    %v301 = vpow.pop %v300
    %v302 = vmul.f32 %v292, 1.442695
    %v303 = vpow.pop %v302
    %v304 = vmul.f32 %v293, 1.442695
    %v305 = vpow.pop %v304
    %v306 = vmul.f32 %v294, 1.442695
    %v307 = vpow.pop %v306
    %v308 = vmul.f32 %v295, 1.442695
    %v309 = vpow.pop %v308
    %v310 = vmul.f32 %v296, 1.442695
    %v311 = vpow.pop %v310
    %v312 = vmul.f32 %v297, 1.442695
    %v313 = vpow.pop %v312
    %322 = vset.pattern.permute.xlu0 0
    %323 = vperm.xlu0 %322, %v299
    %v324 = vpop.permute.xlu0 %323
    %325 = vset.pattern.permute.xlu0 0
    %326 = vperm.xlu0 %325, %v301
    %v327 = vpop.permute.xlu0 %326
    %328 = vset.pattern.permute.xlu0 0
    %329 = vperm.xlu0 %328, %v303
    %v330 = vpop.permute.xlu0 %329
    %331 = vset.pattern.permute.xlu0 0
    %332 = vperm.xlu0 %331, %v305
    %v333 = vpop.permute.xlu0 %332
    %334 = vset.pattern.permute.xlu0 0
    %335 = vperm.xlu0 %334, %v307
    %v336 = vpop.permute.xlu0 %335
    %337 = vset.pattern.permute.xlu0 0
    %338 = vperm.xlu0 %337, %v309
    %v339 = vpop.permute.xlu0 %338
    %340 = vset.pattern.permute.xlu0 0
    %341 = vperm.xlu0 %340, %v311
    %v342 = vpop.permute.xlu0 %341
    %343 = vset.pattern.permute.xlu0 0
    %344 = vperm.xlu0 %343, %v313
    %v345 = vpop.permute.xlu0 %344
    %v346 = vperm.slane %v324, %v245
    %v347 = vperm.slane %v327, %v245
    %v348 = vperm.slane %v330, %v245
    %v349 = vperm.slane %v333, %v245
    %v350 = vperm.slane %v336, %v245
    %v351 = vperm.slane %v339, %v245
    %v352 = vperm.slane %v342, %v245
    %v353 = vperm.slane %v345, %v245
    %v354 = vsel %vm254, %v347, %v346
    %v355 = vsel %vm256, %v348, %v354
    %v356 = vsel %vm258, %v349, %v355
    %v357 = vsel %vm260, %v350, %v356
    %v358 = vsel %vm262, %v351, %v357
    %v359 = vsel %vm264, %v352, %v358
    %v360 = vsel %vm266, %v353, %v359
    %v362 = vsel %vm269, %v360, 0.0
    %363 = vadd.xlane.f32.xlu0 %v362
    %v364 = vpop.xlane.xlu0 %363
    %v365 = vrcp.pop %v364
    %v366 = vmul.f32 %v364, %v365
    %v367 = vsub.f32 1.0, %v366
    %v368 = vmul.f32 %v365, %v367
    %v369 = vadd.f32 %v365, %v368
    %vm370 = vweird.f32 %v364
    %vm371 = vweird.f32 %v365
    %vm372 = vmor %vm370, %vm371
    %v373 = vsel %vm372, %v365, %v369
    %v374 = vand.u32 2147483647, %v364
    %vm375 = vcmp.eq.f32.partialorder %v374, 8.507059e+37
    %v376 = vand.u32 %v364, 2147483648
    %v377 = vor.u32 1.1754944e-38, %v376
    %v378 = vsel %vm375, %v377, %v373
    %v380 = vperm.slane %v378, 0
    %v381 = vperm.slane %v378, 1
    %v382 = vperm.slane %v378, 2
    %v383 = vperm.slane %v378, 3
    %v384 = vperm.slane %v378, 4
    %v385 = vperm.slane %v378, 5
    %v386 = vperm.slane %v378, 6
    %v387 = vperm.slane %v378, 7
    %v396 = vmul.f32 %v299, %v380
    %v397 = vmul.f32 %v301, %v381
    %v398 = vmul.f32 %v303, %v382
    %v399 = vmul.f32 %v305, %v383
    %v400 = vmul.f32 %v307, %v384
    %v401 = vmul.f32 %v309, %v385
    %v402 = vmul.f32 %v311, %v386
    %v403 = vmul.f32 %v313, %v387
    %405 = vset.pattern.permute.xlu0 0
    %406 = vperm.xlu0 %405, %v396
    %v407 = vpop.permute.xlu0 %406
    %410 = vset.pattern.permute.xlu0 0
    %411 = vperm.xlu0 %410, %v397
    %v412 = vpop.permute.xlu0 %411
    %415 = vset.pattern.permute.xlu0 0
    %416 = vperm.xlu0 %415, %v398
    %v417 = vpop.permute.xlu0 %416
    %420 = vset.pattern.permute.xlu0 0
    %421 = vperm.xlu0 %420, %v399
    %v422 = vpop.permute.xlu0 %421
    %425 = vset.pattern.permute.xlu0 0
    %426 = vperm.xlu0 %425, %v400
    %v427 = vpop.permute.xlu0 %426
    %430 = vset.pattern.permute.xlu0 0
    %431 = vperm.xlu0 %430, %v401
    %v432 = vpop.permute.xlu0 %431
    %435 = vset.pattern.permute.xlu0 0
    %436 = vperm.xlu0 %435, %v402
    %v437 = vpop.permute.xlu0 %436
    %440 = vset.pattern.permute.xlu0 0
    %441 = vperm.xlu0 %440, %v403
    %v442 = vpop.permute.xlu0 %441
    %v444 = vmul.f32 %v407, %v107
    %v445 = vmul.f32 %v412, %v108
    %v446 = vmul.f32 %v417, %v109
    %v447 = vmul.f32 %v422, %v110
    %v448 = vmul.f32 %v427, %v111
    %v449 = vmul.f32 %v432, %v112
    %v450 = vmul.f32 %v437, %v113
    %v451 = vmul.f32 %v442, %v114
    %v452 = vsel %vm211, %v444, 0.0
    %v453 = vrot.slane %v452, 4
    %v454 = vadd.f32 %v452, %v453
    %v455 = vrot.slane %v454, 2
    %v456 = vadd.f32 %v454, %v455
    %v457 = vrot.slane %v456, 1
    %v458 = vadd.f32 %v456, %v457
    %v459 = vsel %vm211, %v445, 0.0
    %v460 = vrot.slane %v459, 4
    %v461 = vadd.f32 %v459, %v460
    %v462 = vrot.slane %v461, 2
    %v463 = vadd.f32 %v461, %v462
    %v464 = vrot.slane %v463, 1
    %v465 = vadd.f32 %v463, %v464
    %v466 = vsel %vm211, %v446, 0.0
    %v467 = vrot.slane %v466, 4
    %v468 = vadd.f32 %v466, %v467
    %v469 = vrot.slane %v468, 2
    %v470 = vadd.f32 %v468, %v469
    %v471 = vrot.slane %v470, 1
    %v472 = vadd.f32 %v470, %v471
    %v473 = vsel %vm211, %v447, 0.0
    %v474 = vrot.slane %v473, 4
    %v475 = vadd.f32 %v473, %v474
    %v476 = vrot.slane %v475, 2
    %v477 = vadd.f32 %v475, %v476
    %v478 = vrot.slane %v477, 1
    %v479 = vadd.f32 %v477, %v478
    %v480 = vsel %vm211, %v448, 0.0
    %v481 = vrot.slane %v480, 4
    %v482 = vadd.f32 %v480, %v481
    %v483 = vrot.slane %v482, 2
    %v484 = vadd.f32 %v482, %v483
    %v485 = vrot.slane %v484, 1
    %v486 = vadd.f32 %v484, %v485
    %v487 = vsel %vm211, %v449, 0.0
    %v488 = vrot.slane %v487, 4
    %v489 = vadd.f32 %v487, %v488
    %v490 = vrot.slane %v489, 2
    %v491 = vadd.f32 %v489, %v490
    %v492 = vrot.slane %v491, 1
    %v493 = vadd.f32 %v491, %v492
    %v494 = vsel %vm211, %v450, 0.0
    %v495 = vrot.slane %v494, 4
    %v496 = vadd.f32 %v494, %v495
    %v497 = vrot.slane %v496, 2
    %v498 = vadd.f32 %v496, %v497
    %v499 = vrot.slane %v498, 1
    %v500 = vadd.f32 %v498, %v499
    %v501 = vsel %vm211, %v451, 0.0
    %v502 = vrot.slane %v501, 4
    %v503 = vadd.f32 %v501, %v502
    %v504 = vrot.slane %v503, 2
    %v505 = vadd.f32 %v503, %v504
    %v506 = vrot.slane %v505, 1
    %v507 = vadd.f32 %v505, %v506
    %v508 = vld [vmem:[%s6] sm:$0xff]
    %v509 = vld [vmem:[%s6 + $0x8] sm:$0xff]
    %v510 = vld [vmem:[%s6 + $0x10] sm:$0xff]
    %v511 = vld [vmem:[%s6 + $0x18] sm:$0xff]
    %v512 = vld [vmem:[%s6 + $0x20] sm:$0xff]
    %v513 = vld [vmem:[%s6 + $0x28] sm:$0xff]
    %v514 = vld [vmem:[%s6 + $0x30] sm:$0xff]
    %v515 = vld [vmem:[%s6 + $0x38] sm:$0xff]
    %v516 = vld [vmem:[%s6 + $0x40] sm:$0xff]
    %v517 = vld [vmem:[%s6 + $0x48] sm:$0xff]
    %v518 = vld [vmem:[%s6 + $0x50] sm:$0xff]
    %v519 = vld [vmem:[%s6 + $0x58] sm:$0xff]
    %v520 = vld [vmem:[%s6 + $0x60] sm:$0xff]
    %v521 = vld [vmem:[%s6 + $0x68] sm:$0xff]
    %v522 = vld [vmem:[%s6 + $0x70] sm:$0xff]
    %v523 = vld [vmem:[%s6 + $0x78] sm:$0xff]
    %v524 = vld [vmem:[%s6 + $0x80] sm:$0xff]
    %v525 = vld [vmem:[%s6 + $0x88] sm:$0xff]
    %v534 = vsel %vm254, %v465, %v458
    %v535 = vsel %vm256, %v472, %v534
    %v536 = vsel %vm258, %v479, %v535
    %v537 = vsel %vm260, %v486, %v536
    %v538 = vsel %vm262, %v493, %v537
    %v539 = vsel %vm264, %v500, %v538
    %v540 = vsel %vm266, %v507, %v539
    %v541 = vsel %vm211, %v540, 0
    %543 = vmatpush.msra.mxu0 0.0
    %544 = vmatpush.msra.mxu0 0.0
    %545 = vmatpush.msra.mxu0 0.0
    %546 = vmatpush.msra.mxu0 0.0
    %547 = vmatpush.msra.mxu0 0.0
    %548 = vmatpush.msra.mxu0 0.0
    %549 = vmatpush.msra.mxu0 0.0
    %550 = vmatpush.msra.mxu0 0.0
    %551 = vmatpush.msra.mxu0 0.0
    %552 = vmatpush.msra.mxu0 0.0
    %553 = vmatpush.msra.mxu0 0.0
    %554 = vmatpush.msra.mxu0 0.0
    %555 = vmatpush.msra.mxu0 %v523
    %556 = vmatpush.msra.mxu0 %v520
    %557 = vmatpush.msra.mxu0 %v517
    %558 = vmatpush.msra.mxu0 %v514
    %559 = vmatmul.f32.gmra.mxu0 %v541
    %v560 = vpop.f32.mrf.mxu0
    %v561 = vadd.f32 0.0, %v560
    %562 = vdwg.mxu0
    %563 = vmatpush.msra.mxu0 0.0
    %564 = vmatpush.msra.mxu0 0.0
    %565 = vmatpush.msra.mxu0 0.0
    %566 = vmatpush.msra.mxu0 0.0
    %567 = vmatpush.msra.mxu0 0.0
    %568 = vmatpush.msra.mxu0 0.0
    %569 = vmatpush.msra.mxu0 0.0
    %570 = vmatpush.msra.mxu0 0.0
    %571 = vmatpush.msra.mxu0 0.0
    %572 = vmatpush.msra.mxu0 0.0
    %573 = vmatpush.msra.mxu0 0.0
    %574 = vmatpush.msra.mxu0 0.0
    %575 = vmatpush.msra.mxu0 %v524
    %576 = vmatpush.msra.mxu0 %v521
    %577 = vmatpush.msra.mxu0 %v518
    %578 = vmatpush.msra.mxu0 %v515
    %579 = vmatmul.f32.gmra.mxu0 %v541
    %v580 = vpop.f32.mrf.mxu0
    %v581 = vadd.f32 0.0, %v580
    %582 = vdwg.mxu0
    %583 = vmatpush.msra.mxu0 0.0
    %584 = vmatpush.msra.mxu0 0.0
    %585 = vmatpush.msra.mxu0 0.0
    %586 = vmatpush.msra.mxu0 0.0
    %587 = vmatpush.msra.mxu0 0.0
    %588 = vmatpush.msra.mxu0 0.0
    %589 = vmatpush.msra.mxu0 0.0
    %590 = vmatpush.msra.mxu0 0.0
    %591 = vmatpush.msra.mxu0 0.0
    %592 = vmatpush.msra.mxu0 0.0
    %593 = vmatpush.msra.mxu0 0.0
    %594 = vmatpush.msra.mxu0 0.0
    %595 = vmatpush.msra.mxu0 %v525
    %596 = vmatpush.msra.mxu0 %v522
    %597 = vmatpush.msra.mxu0 %v519
    %598 = vmatpush.msra.mxu0 %v516
    %599 = vmatmul.f32.gmra.mxu0 %v541
    %v600 = vpop.f32.mrf.mxu0
    %v601 = vadd.f32 0.0, %v600
    %602 = vdwg.mxu0
    %vm603 = vcmask 130048
    %v605 = vsel %vm603, %v105, 0
    %607 = vmatpush.msra.mxu0 0.0
    %608 = vmatpush.msra.mxu0 0.0
    %609 = vmatpush.msra.mxu0 0.0
    %610 = vmatpush.msra.mxu0 0.0
    %611 = vmatpush.msra.mxu0 0.0
    %612 = vmatpush.msra.mxu0 0.0
    %613 = vmatpush.msra.mxu0 0.0
    %614 = vmatpush.msra.mxu0 0.0
    %615 = vmatpush.msra.mxu0 0.0
    %616 = vmatpush.msra.mxu0 0.0
    %617 = vmatpush.msra.mxu0 0.0
    %618 = vmatpush.msra.mxu0 0.0
    %619 = vmatpush.msra.mxu0 0.0
    %620 = vmatpush.msra.mxu0 0.0
    %621 = vmatpush.msra.mxu0 %v511
    %622 = vmatpush.msra.mxu0 %v508
    %623 = vmatmul.f32.gmra.mxu0 %v605
    %v624 = vpop.f32.mrf.mxu0
    %v625 = vadd.f32 %v561, %v624
    %626 = vdwg.mxu0
    %627 = vmatpush.msra.mxu0 0.0
    %628 = vmatpush.msra.mxu0 0.0
    %629 = vmatpush.msra.mxu0 0.0
    %630 = vmatpush.msra.mxu0 0.0
    %631 = vmatpush.msra.mxu0 0.0
    %632 = vmatpush.msra.mxu0 0.0
    %633 = vmatpush.msra.mxu0 0.0
    %634 = vmatpush.msra.mxu0 0.0
    %635 = vmatpush.msra.mxu0 0.0
    %636 = vmatpush.msra.mxu0 0.0
    %637 = vmatpush.msra.mxu0 0.0
    %638 = vmatpush.msra.mxu0 0.0
    %639 = vmatpush.msra.mxu0 0.0
    %640 = vmatpush.msra.mxu0 0.0
    %641 = vmatpush.msra.mxu0 %v512
    %642 = vmatpush.msra.mxu0 %v509
    %643 = vmatmul.f32.gmra.mxu0 %v605
    %v644 = vpop.f32.mrf.mxu0
    %v645 = vadd.f32 %v581, %v644
    %646 = vdwg.mxu0
    %647 = vmatpush.msra.mxu0 0.0
    %648 = vmatpush.msra.mxu0 0.0
    %649 = vmatpush.msra.mxu0 0.0
    %650 = vmatpush.msra.mxu0 0.0
    %651 = vmatpush.msra.mxu0 0.0
    %652 = vmatpush.msra.mxu0 0.0
    %653 = vmatpush.msra.mxu0 0.0
    %654 = vmatpush.msra.mxu0 0.0
    %655 = vmatpush.msra.mxu0 0.0
    %656 = vmatpush.msra.mxu0 0.0
    %657 = vmatpush.msra.mxu0 0.0
    %658 = vmatpush.msra.mxu0 0.0
    %659 = vmatpush.msra.mxu0 0.0
    %660 = vmatpush.msra.mxu0 0.0
    %661 = vmatpush.msra.mxu0 %v513
    %662 = vmatpush.msra.mxu0 %v510
    %663 = vmatmul.f32.gmra.mxu0 %v605
    %v664 = vpop.f32.mrf.mxu0
    %v665 = vadd.f32 %v601, %v664
    %666 = vdwg.mxu0
    %v667 = vld [vmem:[%s8] sm:$0x7]
    %v669 = vperm.slane %v667, 0
    %v670 = vperm.slane %v667, 1
    %v671 = vperm.slane %v667, 2
    %v675 = vadd.f32 %v625, %v669
    %v676 = vadd.f32 %v645, %v670
    %v677 = vadd.f32 %v665, %v671
    %v678 = vld [vmem:[#allocation7] sm:$0xff]
    %v679 = vld [vmem:[#allocation7 + $0x8] sm:$0xff]
    %v680 = vld [vmem:[#allocation7 + $0x10] sm:$0xff]
    %v681 = vld [vmem:[#allocation7 + $0x18] sm:$0xff]
    %v682 = vld [vmem:[#allocation7 + $0x20] sm:$0xff]
    %v683 = vld [vmem:[#allocation7 + $0x28] sm:$0xff]
    %v684 = vld [vmem:[#allocation7 + $0x30] sm:$0xff]
    %v685 = vld [vmem:[#allocation7 + $0x38] sm:$0xff]
    %v686 = vld [vmem:[#allocation7 + $0x40] sm:$0xff]
    %v687 = vld [vmem:[#allocation7 + $0x48] sm:$0xff]
    %v688 = vld [vmem:[#allocation7 + $0x50] sm:$0xff]
    %v689 = vld [vmem:[#allocation7 + $0x58] sm:$0xff]
    %v690 = vld [vmem:[#allocation7 + $0x60] sm:$0xff]
    %v691 = vld [vmem:[#allocation7 + $0x68] sm:$0xff]
    %v692 = vld [vmem:[#allocation7 + $0x70] sm:$0xff]
    %v693 = vld [vmem:[#allocation7 + $0x78] sm:$0xff]
    %v694 = vld [vmem:[#allocation7 + $0x80] sm:$0xff]
    %v695 = vld [vmem:[#allocation7 + $0x88] sm:$0xff]
    %v696 = vld [vmem:[#allocation7 + $0x90] sm:$0xff]
    %v697 = vld [vmem:[#allocation7 + $0x98] sm:$0xff]
    %v698 = vld [vmem:[#allocation7 + $0xa0] sm:$0xff]
    %v699 = vld [vmem:[#allocation7 + $0xa8] sm:$0xff]
    %v700 = vld [vmem:[#allocation7 + $0xb0] sm:$0xff]
    %v701 = vld [vmem:[#allocation7 + $0xb8] sm:$0xff]
    %v702 = vld [vmem:[#allocation7 + $0xc0] sm:$0xff]
    %v703 = vld [vmem:[#allocation7 + $0xc8] sm:$0xff]
    %v704 = vld [vmem:[#allocation7 + $0xd0] sm:$0xff]
    %v705 = vld [vmem:[#allocation7 + $0xd8] sm:$0xff]
    %v706 = vld [vmem:[#allocation7 + $0xe0] sm:$0xff]
    %v707 = vld [vmem:[#allocation7 + $0xe8] sm:$0xff]
    %v708 = vld [vmem:[#allocation7 + $0xf0] sm:$0xff]
    %v709 = vld [vmem:[#allocation7 + $0xf8] sm:$0xff]
    %v710 = vld [vmem:[#allocation7 + $0x100] sm:$0xff]
    %v711 = vld [vmem:[#allocation7 + $0x108] sm:$0xff]
    %v712 = vld [vmem:[#allocation7 + $0x110] sm:$0xff]
    %v713 = vld [vmem:[#allocation7 + $0x118] sm:$0xff]
    %v714 = vld [vmem:[#allocation7 + $0x120] sm:$0xff]
    %v715 = vld [vmem:[#allocation7 + $0x128] sm:$0xff]
    %v716 = vld [vmem:[#allocation7 + $0x130] sm:$0xff]
    %v717 = vld [vmem:[#allocation7 + $0x138] sm:$0xff]
    %v718 = vld [vmem:[#allocation7 + $0x140] sm:$0xff]
    %v719 = vld [vmem:[#allocation7 + $0x148] sm:$0xff]
    %v720 = vld [vmem:[#allocation7 + $0x150] sm:$0xff]
    %v721 = vld [vmem:[#allocation7 + $0x158] sm:$0xff]
    %v722 = vld [vmem:[#allocation7 + $0x160] sm:$0xff]
    %v723 = vld [vmem:[#allocation7 + $0x168] sm:$0xff]
    %v724 = vld [vmem:[#allocation7 + $0x170] sm:$0xff]
    %v725 = vld [vmem:[#allocation7 + $0x178] sm:$0xff]
    %v726 = vld [vmem:[%s9] sm:$0x7]
    %v728 = vperm.slane %v726, 0
    %v729 = vperm.slane %v726, 1
    %v730 = vperm.slane %v726, 2
    %734 = vmatpush.msra.mxu0 %v723
    %735 = vmatpush.msra.mxu0 %v720
    %736 = vmatpush.msra.mxu0 %v717
    %737 = vmatpush.msra.mxu0 %v714
    %738 = vmatpush.msra.mxu0 %v711
    %739 = vmatpush.msra.mxu0 %v708
    %740 = vmatpush.msra.mxu0 %v705
    %741 = vmatpush.msra.mxu0 %v702
    %742 = vmatpush.msra.mxu0 %v699
    %743 = vmatpush.msra.mxu0 %v696
    %744 = vmatpush.msra.mxu0 %v693
    %745 = vmatpush.msra.mxu0 %v690
    %746 = vmatpush.msra.mxu0 %v687
    %747 = vmatpush.msra.mxu0 %v684
    %748 = vmatpush.msra.mxu0 %v681
    %749 = vmatpush.msra.mxu0 %v678
    %750 = vmatmul.f32.gmra.mxu0 %v106
    %v751 = vpop.f32.mrf.mxu0
    %v752 = vadd.f32 %v728, %v751
    %753 = vdwg.mxu0
    %754 = vmatpush.msra.mxu0 %v724
    %755 = vmatpush.msra.mxu0 %v721
    %756 = vmatpush.msra.mxu0 %v718
    %757 = vmatpush.msra.mxu0 %v715
    %758 = vmatpush.msra.mxu0 %v712
    %759 = vmatpush.msra.mxu0 %v709
    %760 = vmatpush.msra.mxu0 %v706
    %761 = vmatpush.msra.mxu0 %v703
    %762 = vmatpush.msra.mxu0 %v700
    %763 = vmatpush.msra.mxu0 %v697
    %764 = vmatpush.msra.mxu0 %v694
    %765 = vmatpush.msra.mxu0 %v691
    %766 = vmatpush.msra.mxu0 %v688
    %767 = vmatpush.msra.mxu0 %v685
    %768 = vmatpush.msra.mxu0 %v682
    %769 = vmatpush.msra.mxu0 %v679
    %770 = vmatmul.f32.gmra.mxu0 %v106
    %v771 = vpop.f32.mrf.mxu0
    %v772 = vadd.f32 %v729, %v771
    %773 = vdwg.mxu0
    %774 = vmatpush.msra.mxu0 %v725
    %775 = vmatpush.msra.mxu0 %v722
    %776 = vmatpush.msra.mxu0 %v719
    %777 = vmatpush.msra.mxu0 %v716
    %778 = vmatpush.msra.mxu0 %v713
    %779 = vmatpush.msra.mxu0 %v710
    %780 = vmatpush.msra.mxu0 %v707
    %781 = vmatpush.msra.mxu0 %v704
    %782 = vmatpush.msra.mxu0 %v701
    %783 = vmatpush.msra.mxu0 %v698
    %784 = vmatpush.msra.mxu0 %v695
    %785 = vmatpush.msra.mxu0 %v692
    %786 = vmatpush.msra.mxu0 %v689
    %787 = vmatpush.msra.mxu0 %v686
    %788 = vmatpush.msra.mxu0 %v683
    %789 = vmatpush.msra.mxu0 %v680
    %790 = vmatmul.f32.gmra.mxu0 %v106
    %v791 = vpop.f32.mrf.mxu0
    %v792 = vadd.f32 %v730, %v791
    %793 = vdwg.mxu0
    %v794 = vadd.f32 %v675, %v752
    %v795 = vxor.u32 %v794, 2147483648
    %v796 = vmul.f32 %v795, 1.442695
    %v797 = vpow.pop %v796
    %v798 = vadd.f32 %v797, 1.0
    %v799 = vrcp.pop %v798
    %v800 = vmul.f32 %v798, %v799
    %v801 = vsub.f32 1.0, %v800
    %v802 = vmul.f32 %v799, %v801
    %v803 = vadd.f32 %v799, %v802
    %vm804 = vweird.f32 %v798
    %vm805 = vweird.f32 %v799
    %vm806 = vmor %vm804, %vm805
    %v807 = vsel %vm806, %v799, %v803
    %v808 = vand.u32 2147483647, %v798
    %vm809 = vcmp.eq.f32.partialorder %v808, 8.507059e+37
    %v810 = vand.u32 %v798, 2147483648
    %v811 = vor.u32 1.1754944e-38, %v810
    %v812 = vsel %vm809, %v811, %v807
    %v813 = vmul.f32 1.0, %v812
    %v814 = vadd.f32 %v676, %v772
    %v815 = vxor.u32 %v814, 2147483648
    %v816 = vmul.f32 %v815, 1.442695
    %v817 = vpow.pop %v816
    %v818 = vadd.f32 %v817, 1.0
    %v819 = vrcp.pop %v818
    %v820 = vmul.f32 %v818, %v819
    %v821 = vsub.f32 1.0, %v820
    %v822 = vmul.f32 %v819, %v821
    %v823 = vadd.f32 %v819, %v822
    %vm824 = vweird.f32 %v818
    %vm825 = vweird.f32 %v819
    %vm826 = vmor %vm824, %vm825
    %v827 = vsel %vm826, %v819, %v823
    %v828 = vand.u32 2147483647, %v818
    %vm829 = vcmp.eq.f32.partialorder %v828, 8.507059e+37
    %v830 = vand.u32 %v818, 2147483648
    %v831 = vor.u32 1.1754944e-38, %v830
    %v832 = vsel %vm829, %v831, %v827
    %v833 = vmul.f32 1.0, %v832
    %v834 = vmul.f32 %v813, %v792
    %v835 = vadd.f32 %v677, %v834
    %v836 = vtanh.pop %v835
    %v837 = vsub.f32 1.0, %v833
    %v838 = vmul.f32 %v837, %v836
    %v839 = vmul.f32 %v833, %v106
    %v840 = vadd.f32 %v838, %v839
    %v841 = vld [vmem:[#allocation8] sm:$0xff]
    %v842 = vld [vmem:[#allocation8 + $0x8] sm:$0xff]
    %v843 = vld [vmem:[#allocation8 + $0x10] sm:$0xff]
    %v844 = vld [vmem:[#allocation8 + $0x18] sm:$0xff]
    %v845 = vld [vmem:[#allocation8 + $0x20] sm:$0xff]
    %v846 = vld [vmem:[#allocation8 + $0x28] sm:$0xff]
    %v847 = vld [vmem:[#allocation8 + $0x30] sm:$0xff]
    %v848 = vld [vmem:[#allocation8 + $0x38] sm:$0xff]
    %v849 = vld [vmem:[#allocation8 + $0x40] sm:$0xff]
    %v850 = vld [vmem:[#allocation8 + $0x48] sm:$0xff]
    %v851 = vld [vmem:[#allocation8 + $0x50] sm:$0xff]
    %v852 = vld [vmem:[#allocation8 + $0x58] sm:$0xff]
    %v853 = vld [vmem:[#allocation8 + $0x60] sm:$0xff]
    %v854 = vld [vmem:[#allocation8 + $0x68] sm:$0xff]
    %v855 = vld [vmem:[#allocation8 + $0x70] sm:$0xff]
    %v856 = vld [vmem:[#allocation8 + $0x78] sm:$0xff]
    %v857 = vld [vmem:[%s11] sm:$0x1]
    %v859 = vperm.slane %v857, 0
    %861 = vmatpush.msra.mxu0 %v856
    %862 = vmatpush.msra.mxu0 %v855
    %863 = vmatpush.msra.mxu0 %v854
    %864 = vmatpush.msra.mxu0 %v853
    %865 = vmatpush.msra.mxu0 %v852
    %866 = vmatpush.msra.mxu0 %v851
    %867 = vmatpush.msra.mxu0 %v850
    %868 = vmatpush.msra.mxu0 %v849
    %869 = vmatpush.msra.mxu0 %v848
    %870 = vmatpush.msra.mxu0 %v847
    %871 = vmatpush.msra.mxu0 %v846
    %872 = vmatpush.msra.mxu0 %v845
    %873 = vmatpush.msra.mxu0 %v844
    %874 = vmatpush.msra.mxu0 %v843
    %875 = vmatpush.msra.mxu0 %v842
    %876 = vmatpush.msra.mxu0 %v841
    %877 = vmatmul.f32.gmra.mxu0 %v840
    %v878 = vpop.f32.mrf.mxu0
    %v879 = vadd.f32 %v859, %v878
    %880 = vdwg.mxu0
    %881 = vst [vmem:[#allocation10] sm:$0xff] %v879
    %882 = vst [vmem:[#allocation10 + $0x8] sm:$0xff] %v840
    // Predicated region
    $region66: #{tpu_custom_call.1} parent=1 // pred_check
      _
    $region67: #{tpu_custom_call.1} parent=1 // pred_check_branch
      %884 = sbr.rel (0) target = $region69
    $region68: #{tpu_custom_call.1} parent=1 // pred_region
      %886 = vsyncadd [#allocation4], 0
      %s888 = sshll.u32 [#allocation10], 4
      %s889 = int_to_ptr.vmem [resolvable:$true] %s888
      %s890 = sshll.u32 %s12, 4
      %s891 = int_to_ptr.hbm [resolvable:$true] %s890
      %893 = dma.vmem_to_hbm [thread:$0]  %s889, 256, %s891, [#allocation4]
    $region69: #{tpu_custom_call.1} parent=1 // pred_fallthru
      _
    // Predicated region
    $region70: #{tpu_custom_call.1} parent=1 // pred_check
      _
    $region71: #{tpu_custom_call.1} parent=1 // pred_check_branch
      %895 = sbr.rel (0) target = $region73
    $region72: #{tpu_custom_call.1} parent=1 // pred_region
      %897 = dma.done [#allocation4], 256
    $region73: #{tpu_custom_call.1} parent=1 // pred_fallthru
      _
    %898 = vsyncpa [#allocation3], 1
    %899 = vsyncpa [#allocation6], 1
    %900 = vsyncpa [#allocation9], 1
    %901 = vsyncpa [#allocation4], 1

</llo_original>
